<compile_context>
chip_gen: v7x
topology: tpu7x:2x2x1
jax: 0.10.0
libtpu: 0.0.40
codegen_flags: <defaults>
</compile_context>

<pallas_src>
import functools

import jax
import jax.numpy as jnp
from jax import lax
from jax.experimental import pallas as pl
from jax.experimental.pallas import tpu as pltpu


# --------------------------------- kernels ----------------------------------


def _adain_fused_kernel(gb_ref, x_ref, out_ref, *, eps):
    # gb_ref:  (1, TC, 2)   [..., 0] = gamma, [..., 1] = beta
    # x_ref:   (1, TC, HW)  one sample's channel tile, spatial flattened on lanes
    # out_ref: (1, TC, HW)
    gb = gb_ref[0].astype(jnp.float32)                    # (TC, 2)
    gamma = gb[:, 0:1]                                    # (TC, 1)
    beta = gb[:, 1:2]                                     # (TC, 1)

    x = x_ref[0].astype(jnp.float32)                      # (TC, HW)
    inv_hw = 1.0 / x.shape[-1]

    mean = jnp.sum(x, axis=-1, keepdims=True) * inv_hw    # (TC, 1)
    xc = x - mean                                         # two-pass variance
    var = jnp.sum(xc * xc, axis=-1, keepdims=True) * inv_hw

    scale = gamma * lax.rsqrt(var + eps)                  # (TC, 1)
    out_ref[0] = (xc * scale + beta).astype(out_ref.dtype)


def _stats_kernel(x_ref, sum_ref, sumsq_ref):
    # Accumulate sum / sum-of-squares over the HW grid axis (last, "arbitrary").
    @pl.when(pl.program_id(2) == 0)
    def _():
        sum_ref[...] = jnp.zeros_like(sum_ref)
        sumsq_ref[...] = jnp.zeros_like(sumsq_ref)

    x = x_ref[0].astype(jnp.float32)                      # (TC, THW)
    sum_ref[0] += jnp.sum(x, axis=-1, keepdims=True)
    sumsq_ref[0] += jnp.sum(x * x, axis=-1, keepdims=True)


def _apply_kernel(ss_ref, x_ref, out_ref):
    # ss_ref: (1, TC, 2)  [..., 0] = scale, [..., 1] = shift (precomputed in XLA)
    ss = ss_ref[0].astype(jnp.float32)
    scale = ss[:, 0:1]
    shift = ss[:, 1:2]
    x = x_ref[0].astype(jnp.float32)
    out_ref[0] = (x * scale + shift).astype(out_ref.dtype)


# ------------------------------ tiling helpers -------------------------------

_MIN_GRID_STEPS = 8  # ~4 steps per core on a 2-TensorCore (v7x) chip


def _vmem_params():
    """Return (per-tile budget, vmem_limit_bytes), generation-aware."""
    phys = 128 << 20
    try:
        phys = int(getattr(pltpu.get_tpu_info(), "vmem_capacity_bytes", phys))
    except Exception:
        pass
    if phys <= (64 << 20):              # v7x: 64 MiB VMEM per TensorCore
        return 16 << 20, 32 << 20
    return 48 << 20, 96 << 20           # v5e / v6e: 128 MiB


def _sublane_quantum(itemsize):
    return {4: 8, 2: 16, 1: 32}.get(itemsize, 8)


def _legal_channel_tiles(C, sub):
    """Channel tile sizes that keep the (.., tc, lanes) block shape legal."""
    tiles = [t for t in range(sub, C, sub) if C % t == 0]
    tiles.append(C)                     # full dim is always legal
    return tiles


def _footprint(tc, lanes, itemsize):
    """Double-buffered in + out blocks plus fp32 upcast temporaries."""
    io = 4 * tc * lanes * itemsize      # 2x input + 2x output buffers
    f32_tmp = 2 * tc * lanes * 4        # fp32 copy of the tile + centered / x*x temp
    return io + f32_tmp


def _pick_channel_tile(B, C, HW, itemsize, budget):
    """Largest legal channel tile whose whole-HW block fits `budget`, preferring
    tiles that leave >= _MIN_GRID_STEPS grid steps.  None -> need HW chunking."""
    tiles = _legal_channel_tiles(C, _sublane_quantum(itemsize))
    fitting = [t for t in tiles if _footprint(t, HW, itemsize) <= budget]
    if not fitting:
        return None
    enough = [t for t in fitting if B * (C // t) >= _MIN_GRID_STEPS]
    return max(enough) if enough else max(fitting)


def _pick_hw_tile(tc, HW, itemsize, budget):
    """Largest multiple-of-128 divisor of HW whose (tc, thw) block fits `budget`."""
    best = None
    for t in range(128, HW, 128):
        if HW % t == 0 and _footprint(tc, t, itemsize) <= budget:
            best = t
    return best


# --------------------------------- wrapper -----------------------------------


def adaptive_instance_norm(x, style, weight, bias, eps=1e-5):
    """x: (B, C, H, W) NCHW; style: (B, style_dim); weight: (2C, style_dim); bias: (2C,)."""
    B, C, H, W = x.shape
    HW = H * W
    itemsize = x.dtype.itemsize

    # Style modulation hoisted out of the kernel: one batched MXU matmul in XLA
    # instead of a degenerate N=1 matmul per grid step.
    s = (style.astype(jnp.float32) @ weight.astype(jnp.float32).T
         + bias.astype(jnp.float32))                       # (B, 2C)
    gamma, beta = s[:, :C], s[:, C:]                       # (B, C) each

    x_flat = x.reshape(B, C, HW)
    budget, vmem_limit = _vmem_params()
    tc = _pick_channel_tile(B, C, HW, itemsize, budget)

    if tc is not None:
        # ----- resident path: whole (tc, HW) slab in VMEM, single fused pass -----
        gb = jnp.stack([gamma, beta], axis=-1)             # (B, C, 2)
        n_ct = C // tc
        out_flat = pl.pallas_call(
            functools.partial(_adain_fused_kernel, eps=eps),
            out_shape=jax.ShapeDtypeStruct((B, C, HW), x.dtype),
            grid=(B, n_ct),
            in_specs=[
                pl.BlockSpec((1, tc, 2), lambda b, c: (b, c, 0)),    # gamma|beta
                pl.BlockSpec((1, tc, HW), lambda b, c: (b, c, 0)),   # features
            ],
            out_specs=pl.BlockSpec((1, tc, HW), lambda b, c: (b, c, 0)),
            compiler_params=pltpu.CompilerParams(
                dimension_semantics=("parallel", "parallel"),
                vmem_limit_bytes=vmem_limit),
        )(gb, x_flat)
        return out_flat.reshape(B, C, H, W)

    # ----- chunked-HW path (large feature maps): stats pass + apply pass --------
    sub = _sublane_quantum(itemsize)
    tc = min(_legal_channel_tiles(C, sub))
    thw = _pick_hw_tile(tc, HW, itemsize, budget)
    if thw is None:
        # TODO(synk): HW has no multiple-of-128 divisor that fits the budget;
        # fall back to whole-HW blocks with the smallest channel tile.
        thw = HW
    n_ct, n_hw = C // tc, HW // thw

    sums, sumsqs = pl.pallas_call(
        _stats_kernel,
        out_shape=(jax.ShapeDtypeStruct((B, C, 1), jnp.float32),
                   jax.ShapeDtypeStruct((B, C, 1), jnp.float32)),
        grid=(B, n_ct, n_hw),
        in_specs=[pl.BlockSpec((1, tc, thw), lambda b, c, h: (b, c, h))],
        out_specs=(pl.BlockSpec((1, tc, 1), lambda b, c, h: (b, c, 0)),
                   pl.BlockSpec((1, tc, 1), lambda b, c, h: (b, c, 0))),
        compiler_params=pltpu.CompilerParams(
            dimension_semantics=("parallel", "parallel", "arbitrary"),
            vmem_limit_bytes=vmem_limit),
    )(x_flat)

    mean = sums[..., 0] / HW                               # (B, C)
    # TODO(synk): chunked stats use one-pass E[x^2]-mean^2 (clamped); a two-pass /
    # Welford stats kernel would be bit-closer when |mean| >> std at very large HW.
    var = jnp.maximum(sumsqs[..., 0] / HW - mean * mean, 0.0)
    scale = gamma * lax.rsqrt(var + eps)
    shift = beta - scale * mean
    ss = jnp.stack([scale, shift], axis=-1)                # (B, C, 2)

    out_flat = pl.pallas_call(
        _apply_kernel,
        out_shape=jax.ShapeDtypeStruct((B, C, HW), x.dtype),
        grid=(B, n_ct, n_hw),
        in_specs=[
            pl.BlockSpec((1, tc, 2), lambda b, c, h: (b, c, 0)),     # scale|shift
            pl.BlockSpec((1, tc, thw), lambda b, c, h: (b, c, h)),   # features
        ],
        out_specs=pl.BlockSpec((1, tc, thw), lambda b, c, h: (b, c, h)),
        compiler_params=pltpu.CompilerParams(
            dimension_semantics=("parallel", "parallel", "parallel"),
            vmem_limit_bytes=vmem_limit),
    )(ss, x_flat)
    return out_flat.reshape(B, C, H, W)


# -------------------------------- reference ----------------------------------


def _reference(x, style, weight, bias, eps=1e-5):
    """Pure-JAX reference matching the PyTorch module."""
    s = style @ weight.T + bias                            # (B, 2C)
    C = x.shape[1]
    gamma = s[:, :C][:, :, None, None]
    beta = s[:, C:][:, :, None, None]
    mean = jnp.mean(x, axis=(2, 3), keepdims=True)
    var = jnp.mean(jnp.square(x - mean), axis=(2, 3), keepdims=True)
    norm = (x - mean) / jnp.sqrt(var + eps)
    return gamma * norm + beta


if __name__ == "__main__":
    key = jax.random.PRNGKey(0)
    k_x, k_s, k_w = jax.random.split(key, 3)

    B, fin, H, W = 2, 4, 16, 16
    style_dim = 32

    x = jax.random.normal(k_x, (B, fin, H, W), dtype=jnp.float32)
    style = jax.random.normal(k_s, (B, style_dim), dtype=jnp.float32)

    # Deterministic parameter init matching module __init__ shapes:
    #   self.style = nn.Linear(style_dim, fin*2); bias[:fin]=1, bias[fin:]=0
    weight = 0.02 * jax.random.normal(k_w, (2 * fin, style_dim), dtype=jnp.float32)
    bias = jnp.concatenate(
        [jnp.ones((fin,), jnp.float32), jnp.zeros((fin,), jnp.float32)])

    out = adaptive_instance_norm(x, style, weight, bias)
    out = jax.block_until_ready(out)

    ref = _reference(x, style, weight, bias)
    assert out.shape == (B, fin, H, W)
    assert jnp.allclose(out, ref, atol=1e-4, rtol=1e-4), "mismatch vs reference"

    print("KERNEL_OK")
</pallas_src>

<mosaic_0001>
module attributes {stable_mosaic.version = 11 : i64} {
  func.func @_adain_fused_kernel(%arg0: i32, %arg1: i32, %arg2: memref<1x4x2xf32, #tpu.memory_space<vmem>>, %arg3: memref<1x4x256xf32, #tpu.memory_space<vmem>>, %arg4: memref<1x4x256xf32, #tpu.memory_space<vmem>>) attributes {dimension_semantics = [#tpu.dimension_semantics<parallel>, #tpu.dimension_semantics<parallel>], iteration_bounds = array<i64: 2, 1>, scalar_prefetch = 0 : i64, scratch_operands = 0 : i64, tpu.core_type = #tpu.core_type<tc>, window_params = [{transform_indices = @transform_0, window_bounds = array<i64: 1, 4, 2>}, {transform_indices = @transform_1, window_bounds = array<i64: 1, 4, 256>}, {transform_indices = @transform_2, window_bounds = array<i64: 1, 4, 256>}]} {
    %c0 = arith.constant 0 : index
    %c0_0 = arith.constant 0 : index
    %c0_1 = arith.constant 0 : index
    %0 = vector.load %arg2[%c0, %c0_0, %c0_1] : memref<1x4x2xf32, #tpu.memory_space<vmem>>, vector<1x4x2xf32>
    %1 = vector.shape_cast %0 : vector<1x4x2xf32> to vector<4x2xf32>
    %2 = vector.extract_strided_slice %1 {offsets = [0, 0], sizes = [4, 1], strides = [1, 1]} : vector<4x2xf32> to vector<4x1xf32>
    %3 = vector.extract_strided_slice %1 {offsets = [0, 1], sizes = [4, 1], strides = [1, 1]} : vector<4x2xf32> to vector<4x1xf32>
    %c0_2 = arith.constant 0 : index
    %c0_3 = arith.constant 0 : index
    %c0_4 = arith.constant 0 : index
    %4 = vector.load %arg3[%c0_2, %c0_3, %c0_4] : memref<1x4x256xf32, #tpu.memory_space<vmem>>, vector<1x4x256xf32>
    %5 = vector.shape_cast %4 : vector<1x4x256xf32> to vector<4x256xf32>
    %cst = arith.constant dense<0.000000e+00> : vector<4xf32>
    %6 = vector.multi_reduction <add>, %5, %cst [1] : vector<4x256xf32> to vector<4xf32>
    %7 = vector.shape_cast %6 : vector<4xf32> to vector<4x1xf32>
    %cst_5 = arith.constant 3.906250e-03 : f32
    %8 = vector.broadcast %cst_5 : f32 to vector<4x1xf32>
    %9 = arith.mulf %7, %8 : vector<4x1xf32>
    %10 = vector.broadcast %9 : vector<4x1xf32> to vector<4x256xf32>
    %11 = arith.subf %5, %10 : vector<4x256xf32>
    %12 = arith.mulf %11, %11 : vector<4x256xf32>
    %cst_6 = arith.constant dense<0.000000e+00> : vector<4xf32>
    %13 = vector.multi_reduction <add>, %12, %cst_6 [1] : vector<4x256xf32> to vector<4xf32>
    %14 = vector.shape_cast %13 : vector<4xf32> to vector<4x1xf32>
    %cst_7 = arith.constant 3.906250e-03 : f32
    %15 = vector.broadcast %cst_7 : f32 to vector<4x1xf32>
    %16 = arith.mulf %14, %15 : vector<4x1xf32>
    %cst_8 = arith.constant 9.99999974E-6 : f32
    %17 = vector.broadcast %cst_8 : f32 to vector<4x1xf32>
    %18 = arith.addf %16, %17 : vector<4x1xf32>
    %19 = math.rsqrt %18 : vector<4x1xf32>
    %20 = arith.mulf %2, %19 : vector<4x1xf32>
    %21 = vector.broadcast %20 : vector<4x1xf32> to vector<4x256xf32>
    %22 = arith.mulf %11, %21 : vector<4x256xf32>
    %23 = vector.broadcast %3 : vector<4x1xf32> to vector<4x256xf32>
    %24 = arith.addf %22, %23 : vector<4x256xf32>
    %c0_9 = arith.constant 0 : index
    %c0_10 = arith.constant 0 : index
    %c0_11 = arith.constant 0 : index
    %25 = vector.load %arg4[%c0_9, %c0_10, %c0_11] : memref<1x4x256xf32, #tpu.memory_space<vmem>>, vector<1x4x256xf32>
    %26 = vector.shape_cast %25 : vector<1x4x256xf32> to vector<4x256xf32>
    %27 = vector.shape_cast %24 : vector<4x256xf32> to vector<1x4x256xf32>
    tpu.vector_store %arg4[%c0_9, %c0_10, %c0_11], %27 {strides = array<i32>} : memref<1x4x256xf32, #tpu.memory_space<vmem>>, vector<1x4x256xf32>,
    return
  }
  func.func @transform_0(%arg0: i32, %arg1: i32) -> (i32, i32, i32) {
    %c0_i32 = arith.constant 0 : i32
    %c0_i32_0 = arith.constant 0 : i32
    return %arg0, %arg1, %c0_i32 : i32, i32, i32
  }
  func.func @transform_1(%arg0: i32, %arg1: i32) -> (i32, i32, i32) {
    %c0_i32 = arith.constant 0 : i32
    %c0_i32_0 = arith.constant 0 : i32
    return %arg0, %arg1, %c0_i32 : i32, i32, i32
  }
  func.func @transform_2(%arg0: i32, %arg1: i32) -> (i32, i32, i32) {
    %c0_i32 = arith.constant 0 : i32
    %c0_i32_0 = arith.constant 0 : i32
    return %arg0, %arg1, %c0_i32 : i32, i32, i32
  }
}

</mosaic_0001>

<llo_original>
// kernel: tpu_custom_call.1
$region0: #{tpu_custom_call.1}
  #allocation0 [shape = 'u32[]', space=smem, size = 0x4, offset = 0x4, fixed_abs, tag = 'smem constant byte address 0x4 - core index']
  #allocation1 [shape = 'u32[144,128]{1,0:T(1,128)}', space=vmem, size = 0x12000, scoped, tag = 'internal scratch']
  %s0 = inlined_call_operand.hbm [shape: f32[2,4,2], index: 0, kind: input, shape index: {}]
  %s1 = inlined_call_operand.hbm [shape: f32[2,4,256], index: 1, kind: input, shape index: {}]
  %s2 = inlined_call_operand.hbm [shape: f32[2,4,256], index: 2, kind: output, shape index: {}]
  %s3 = sld [smem:[#allocation0]]
  $region49: #{tpu_custom_call.1} parent=0
    _
  %s5 = ssub.s32 1, %s3
  %s6 = scalar_select 0, %s5, %s3
  $region1: #{tpu_custom_call.1} parent=0
    #allocation2 [shape = 'u8[4096]{0}', space=vmem, size = 0x1000, scoped, tag = 'input window, operand 0']
    #allocation3 [shape = 's32[2]{0}', space=sflag, size = 0x8, scoped, tag = 'scoped memory for tpu_custom_call.1']
    #allocation4 [shape = 's32[2]{0}', space=sflag, size = 0x8, scoped, tag = 'scoped memory for tpu_custom_call.1']
    #allocation5 [shape = 'u8[8192]{0}', space=vmem, size = 0x2000, scoped, tag = 'input window, operand 1']
    #allocation6 [shape = 's32[2]{0}', space=sflag, size = 0x8, scoped, tag = 'scoped memory for tpu_custom_call.1']
    #allocation7 [shape = 'u8[8192]{0}', space=vmem, size = 0x2000, scoped, tag = 'output window, operand 0']
    %7 = vsyncpa [#allocation3], 0
    %s8 = scalar_lea.sflag [#allocation3], 1
    %9 = vsyncpa %s8, 0
    %10 = vsyncpa [#allocation6], 0
    %s11 = scalar_lea.sflag [#allocation6], 1
    %12 = vsyncpa %s11, 0
    %13 = vsyncpa [#allocation4], 0
    %s14 = scalar_lea.sflag [#allocation4], 1
    %15 = vsyncpa %s14, 0
    loop: start=0, step=1, limit=4
    $region2: #{tpu_custom_call.1} parent=1 // loop_pre_header
      _
    $region3: #{tpu_custom_call.1} parent=1 // loop_header
      %s17 = sphi 0, %s21
      %p18 = scmp.ge.s32.totalorder %s17, 4
      %s24 = sphi 0, %s36
      %s25 = sphi 0, %s32
      %s26 = sphi 0, %s24
      %s27 = sphi 0, %s25
      %s28 = sphi 0, %s26
      %s29 = sphi 0, %s27
      %s41 = sphi 0, %s43
      %s44 = sphi 0, %s41
      %s45 = sphi 0, %s44
      %s61 = sphi 0, %s45
      %s69 = sphi 0, %s71
      %s72 = sphi 0, %s69
      %s73 = sphi 0, %s72
      %s89 = sphi 0, %s73
      %s97 = sphi 0, %s99
      %s100 = sphi 0, %s97
      %s101 = sphi 0, %s100
      %s117 = sphi 0, %s101
    $region4: #{tpu_custom_call.1} parent=1 // loop_header_branch
      %20 = sbr.rel (%p18) target = $region8
    $region5: #{tpu_custom_call.1} parent=1 // loop_body
      %s22 = ssub.s32 %s17, 1
      %s23 = ssub.s32 %s17, 2
      %s30 = sadd.s32 1, %s25
      %p31 = scmp.ge.s32.totalorder %s30, 1
      %s32 = scalar_select %p31, 0, %s30
      %s33 = sadd.s32 1, %s24
      %s34 = scalar_select %p31, %s33, %s24
      %p35 = scmp.ge.s32.totalorder %s34, 2
      %s36 = scalar_select %p35, 0, %s34
      %s37 = ssub.s32 %s24, %s36
      %s38 = ssub.s32 %s25, %s32
      %s39 = sor.u32 %s37, %s38
      %p40 = scmp.eq.s32.totalorder %s39, 0
      %s42 = sadd.s32 %s41, 1
      %s43 = scalar_select %p40, %s41, %s42
      %p46 = pneg %p40
      %p47 = scmp.eq.s32.totalorder %s17, 1
      %p48 = por %p46, %p47
      %p49 = scmp.ne.s32.totalorder %s41, %s44
      %p50 = scmp.eq.s32.totalorder %s17, 0
      %p51 = por %p49, %p50
      %p52 = scmp.ne.s32.totalorder %s41, %s44
      %p53 = scmp.eq.s32.totalorder %s22, 1
      %p54 = por %p52, %p53
      %p55 = scmp.ne.s32.totalorder %s44, %s45
      %p56 = scmp.eq.s32.totalorder %s22, 0
      %p57 = por %p55, %p56
      %p58 = scmp.ne.s32.totalorder %s44, %s45
      %p59 = scmp.eq.s32.totalorder %s23, 1
      %p60 = por %p58, %p59
      %p62 = scmp.ne.s32.totalorder %s45, %s61
      %p63 = scmp.eq.s32.totalorder %s23, 0
      %p64 = por %p62, %p63
      %s65 = ssub.s32 %s24, %s36
      %s66 = ssub.s32 %s25, %s32
      %s67 = sor.u32 %s65, %s66
      %p68 = scmp.eq.s32.totalorder %s67, 0
      %s70 = sadd.s32 %s69, 1
      %s71 = scalar_select %p68, %s69, %s70
      %p74 = pneg %p68
      %p75 = scmp.eq.s32.totalorder %s17, 1
      %p76 = por %p74, %p75
      %p77 = scmp.ne.s32.totalorder %s69, %s72
      %p78 = scmp.eq.s32.totalorder %s17, 0
      %p79 = por %p77, %p78
      %p80 = scmp.ne.s32.totalorder %s69, %s72
      %p81 = scmp.eq.s32.totalorder %s22, 1
      %p82 = por %p80, %p81
      %p83 = scmp.ne.s32.totalorder %s72, %s73
      %p84 = scmp.eq.s32.totalorder %s22, 0
      %p85 = por %p83, %p84
      %p86 = scmp.ne.s32.totalorder %s72, %s73
      %p87 = scmp.eq.s32.totalorder %s23, 1
      %p88 = por %p86, %p87
      %p90 = scmp.ne.s32.totalorder %s73, %s89
      %p91 = scmp.eq.s32.totalorder %s23, 0
      %p92 = por %p90, %p91
      %s93 = ssub.s32 %s24, %s36
      %s94 = ssub.s32 %s25, %s32
      %s95 = sor.u32 %s93, %s94
      %p96 = scmp.eq.s32.totalorder %s95, 0
      %s98 = sadd.s32 %s97, 1
      %s99 = scalar_select %p96, %s97, %s98
      %p102 = pneg %p96
      %p103 = scmp.eq.s32.totalorder %s17, 1
      %p104 = por %p102, %p103
      %p105 = scmp.ne.s32.totalorder %s97, %s100
      %p106 = scmp.eq.s32.totalorder %s17, 0
      %p107 = por %p105, %p106
      %p108 = scmp.ne.s32.totalorder %s97, %s100
      %p109 = scmp.eq.s32.totalorder %s22, 1
      %p110 = por %p108, %p109
      %p111 = scmp.ne.s32.totalorder %s100, %s101
      %p112 = scmp.eq.s32.totalorder %s22, 0
      %p113 = por %p111, %p112
      %p114 = scmp.ne.s32.totalorder %s100, %s101
      %p115 = scmp.eq.s32.totalorder %s23, 1
      %p116 = por %p114, %p115
      %p118 = scmp.ne.s32.totalorder %s101, %s117
      %p119 = scmp.eq.s32.totalorder %s23, 0
      %p120 = por %p118, %p119
      %p121 = scmp.le.s32.totalorder 1, %s17
      %p122 = scmp.lt.s32.totalorder %s17, 3
      %p123 = pnand %p121, %p122
      %p124 = pneg %p123
      // Predicated region
      $region9: #{tpu_custom_call.1} parent=5 // pred_check
        _
      $region10: #{tpu_custom_call.1} parent=5 // pred_check_branch
        %126 = sbr.rel (%p123) target = $region12
      $region11: #{tpu_custom_call.1} parent=5 // pred_region
        %s127 = ssub.s32 %s17, 1
      $region12: #{tpu_custom_call.1} parent=5 // pred_fallthru
        _
      %p128 = scmp.lt.s32.totalorder %s17, 2
      // Predicated region
      $region13: #{tpu_custom_call.1} parent=5 // pred_check
        %p129 = pneg %p128
      $region14: #{tpu_custom_call.1} parent=5 // pred_check_branch
        %131 = sbr.rel (%p129) target = $region16
      $region15: #{tpu_custom_call.1} parent=5 // pred_region
        // Predicated region
        $region17: #{tpu_custom_call.1} parent=15 // pred_check
          %p132 = pneg %p51
        $region18: #{tpu_custom_call.1} parent=15 // pred_check_branch
          %134 = sbr.rel (%p132) target = $region20
        $region19: #{tpu_custom_call.1} parent=15 // pred_region
          %s135 = sand.u32 %s41, 1
          %s136 = scalar_lea.sflag [#allocation3], %s135
          %s137 = sand.u32 %s41, 1
          %s138 = smul.addr %s137, 4
          %s139 = scalar_lea.vmem [#allocation2], %s138
          %s141 = ssub.s32 64, 64
          %142 = vsyncadd %s136, %s141
          %s143 = sadd.s32 %s25, %s24
          %s144 = smul.addr %s143, 64
          %s145 = scalar_lea.hbm %s0, %s144
          %s147 = sshll.u32 %s139, 4
          %s148 = int_to_ptr.vmem [resolvable:$true] %s147
          %150 = dma.hbm_to_vmem [thread:$0]  %s145, 64, %s148, %s136
        $region20: #{tpu_custom_call.1} parent=15 // pred_fallthru
          _
        // Predicated region
        $region21: #{tpu_custom_call.1} parent=15 // pred_check
          %p151 = pneg %p79
        $region22: #{tpu_custom_call.1} parent=15 // pred_check_branch
          %153 = sbr.rel (%p151) target = $region24
        $region23: #{tpu_custom_call.1} parent=15 // pred_region
          %s154 = sand.u32 %s69, 1
          %s155 = scalar_lea.sflag [#allocation6], %s154
          %s156 = sand.u32 %s69, 1
          %s157 = smul.addr %s156, 8
          %s158 = scalar_lea.vmem [#allocation5], %s157
          %s160 = ssub.s32 128, 128
          %161 = vsyncadd %s155, %s160
          %s162 = smul.addr %s25, 2
          %s163 = smul.addr %s24, 2
          %s164 = sadd.s32 %s162, %s163
          %s165 = smul.addr %s164, 64
          %s166 = scalar_lea.hbm %s1, %s165
          %s168 = sshll.u32 %s158, 4
          %s169 = int_to_ptr.vmem [resolvable:$true] %s168
          %171 = dma.hbm_to_vmem [thread:$0]  %s166, 128, %s169, %s155
        $region24: #{tpu_custom_call.1} parent=15 // pred_fallthru
          _
      $region16: #{tpu_custom_call.1} parent=5 // pred_fallthru
        _
      %p172 = scmp.le.s32.totalorder 1, %s17
      %p173 = scmp.lt.s32.totalorder %s17, 3
      %p174 = pnand %p172, %p173
      %p175 = pneg %p174
      // Predicated region
      $region25: #{tpu_custom_call.1} parent=5 // pred_check
        _
      $region26: #{tpu_custom_call.1} parent=5 // pred_check_branch
        %177 = sbr.rel (%p174) target = $region28
      $region27: #{tpu_custom_call.1} parent=5 // pred_region
        %s178 = ssub.s32 %s17, 1
        %s179 = sand.u32 %s44, 1
        %s180 = scalar_lea.sflag [#allocation3], %s179
        %s181 = sand.u32 %s44, 1
        %s182 = smul.addr %s181, 4
        %s183 = scalar_lea.vmem [#allocation2], %s182
        // Predicated region
        $region29: #{tpu_custom_call.1} parent=27 // pred_check
          %p184 = pneg %p57
        $region30: #{tpu_custom_call.1} parent=27 // pred_check_branch
          %186 = sbr.rel (%p184) target = $region32
        $region31: #{tpu_custom_call.1} parent=27 // pred_region
          %187 = dma.done %s180, 64
        $region32: #{tpu_custom_call.1} parent=27 // pred_fallthru
          _
        %s188 = sand.u32 %s72, 1
        %s189 = scalar_lea.sflag [#allocation6], %s188
        %s190 = sand.u32 %s72, 1
        %s191 = smul.addr %s190, 8
        %s192 = scalar_lea.vmem [#allocation5], %s191
        // Predicated region
        $region33: #{tpu_custom_call.1} parent=27 // pred_check
          %p193 = pneg %p85
        $region34: #{tpu_custom_call.1} parent=27 // pred_check_branch
          %195 = sbr.rel (%p193) target = $region36
        $region35: #{tpu_custom_call.1} parent=27 // pred_region
          %196 = dma.done %s189, 128
        $region36: #{tpu_custom_call.1} parent=27 // pred_fallthru
          _
        %s197 = sand.u32 %s44, 1
        %s198 = scalar_lea.sflag [#allocation3], %s197
        %s199 = sand.u32 %s44, 1
        %s200 = smul.addr %s199, 4
        %s201 = scalar_lea.vmem [#allocation2], %s200
        %p202 = pneg %p57
        %p203 = pneg %p54
        %s204 = sand.u32 %s72, 1
        %s205 = scalar_lea.sflag [#allocation6], %s204
        %s206 = sand.u32 %s72, 1
        %s207 = smul.addr %s206, 8
        %s208 = scalar_lea.vmem [#allocation5], %s207
        %p209 = pneg %p85
        %p210 = pneg %p82
        %p211 = pneg %p113
        %p212 = pneg %p110
        %s213 = sand.u32 %s100, 1
        %s214 = scalar_lea.sflag [#allocation4], %s213
        %s215 = sand.u32 %s100, 1
        %s216 = smul.addr %s215, 8
        %s217 = scalar_lea.vmem [#allocation7], %s216
        %v218 = vld [vmem:[%s183] sm:$0xf]
        %v219 = vld [vmem:[%s192] sm:$0xff]
        %v221 = vcombine.high %v219, %v219
        %vm223 = vcmask 1043456
        %v224 = vsel %vm223, %v219, 0.0
        %v225 = vsel %vm223, %v221, 0.0
        %v226 = vadd.f32 %v224, %v225
        %227 = vadd.xlane.f32.xlu0 %v226
        %v228 = vpop.xlane.xlu0 %227
        %v229 = vmul.f32 %v228, 0.00390625
        %v232 = vunpack.c.l.s4 839922192
        %v233 = vunpack.c.0.s8 %v232
        %v234 = vlaneseq
        %v235 = vshrl.u32 %v234, 7
        %v236 = vsub.s32 %v233, %v235
        %v237 = vrot.slane %v229, %v236
        %v239 = vsub.f32 %v219, %v237
        %v240 = vmul.f32 %v239, %v239
        %v242 = vcombine.high %v240, %v240
        %v244 = vsel %vm223, %v240, 0.0
        %v245 = vsel %vm223, %v242, 0.0
        %v246 = vadd.f32 %v244, %v245
        %247 = vadd.xlane.f32.xlu0 %v246
        %v248 = vpop.xlane.xlu0 %247
        %v249 = vmul.f32 %v248, 0.00390625
        %v250 = vadd.f32 %v249, 1e-05
        %v251 = vrsqrt.pop %v250
        %v252 = vmul.f32 %v218, %v251
        %254 = vset.pattern.permute.xlu0 0
        %255 = vperm.xlu0 %254, %v252
        %v256 = vpop.permute.xlu0 %255
        %v258 = vunpack.c.l.s4 839922192
        %v259 = vunpack.c.0.s8 %v258
        %v260 = vlaneseq
        %v261 = vshrl.u32 %v260, 7
        %v262 = vsub.s32 %v259, %v261
        %v263 = vrot.slane %v256, %v262
        %v265 = vmul.f32 %v239, %v263
        %267 = vset.pattern.permute.xlu0 1
        %268 = vperm.xlu0 %267, %v218
        %v269 = vpop.permute.xlu0 %268
        %v271 = vunpack.c.l.s4 839922192
        %v272 = vunpack.c.0.s8 %v271
        %v273 = vlaneseq
        %v274 = vshrl.u32 %v273, 7
        %v275 = vsub.s32 %v272, %v274
        %v276 = vrot.slane %v269, %v275
        %v278 = vadd.f32 %v265, %v276
        %279 = vst [vmem:[%s217] sm:$0xff] %v278
        %s280 = sand.u32 %s100, 1
        %s281 = scalar_lea.sflag [#allocation4], %s280
        %s282 = sand.u32 %s100, 1
        %s283 = smul.addr %s282, 8
        %s284 = scalar_lea.vmem [#allocation7], %s283
        // Predicated region
        $region37: #{tpu_custom_call.1} parent=27 // pred_check
          %p285 = pneg %p110
        $region38: #{tpu_custom_call.1} parent=27 // pred_check_branch
          %287 = sbr.rel (%p285) target = $region40
        $region39: #{tpu_custom_call.1} parent=27 // pred_region
          %s289 = ssub.s32 128, 128
          %290 = vsyncadd %s281, %s289
          %s291 = smul.addr %s27, 2
          %s292 = smul.addr %s26, 2
          %s293 = sadd.s32 %s291, %s292
          %s294 = smul.addr %s293, 64
          %s295 = scalar_lea.hbm %s2, %s294
          %s297 = sshll.u32 %s284, 4
          %s298 = int_to_ptr.vmem [resolvable:$true] %s297
          %300 = dma.vmem_to_hbm [thread:$0]  %s298, 128, %s295, %s281
        $region40: #{tpu_custom_call.1} parent=27 // pred_fallthru
          _
      $region28: #{tpu_custom_call.1} parent=5 // pred_fallthru
        _
      %p301 = scmp.le.s32.totalorder 2, %s17
      // Predicated region
      $region41: #{tpu_custom_call.1} parent=5 // pred_check
        %p302 = pneg %p301
      $region42: #{tpu_custom_call.1} parent=5 // pred_check_branch
        %304 = sbr.rel (%p302) target = $region44
      $region43: #{tpu_custom_call.1} parent=5 // pred_region
        %s305 = ssub.s32 %s17, 2
        // Predicated region
        $region45: #{tpu_custom_call.1} parent=43 // pred_check
          %p306 = pneg %p116
        $region46: #{tpu_custom_call.1} parent=43 // pred_check_branch
          %308 = sbr.rel (%p306) target = $region48
        $region47: #{tpu_custom_call.1} parent=43 // pred_region
          %s309 = sand.u32 %s101, 1
          %s310 = scalar_lea.sflag [#allocation4], %s309
          %s311 = sand.u32 %s101, 1
          %s312 = smul.addr %s311, 8
          %s313 = scalar_lea.vmem [#allocation7], %s312
          %314 = dma.done %s310, 128
        $region48: #{tpu_custom_call.1} parent=43 // pred_fallthru
          _
      $region44: #{tpu_custom_call.1} parent=5 // pred_fallthru
        _
    $region6: #{tpu_custom_call.1} parent=1 // loop_footer
      %s21 = sadd.s32 1, %s17
    $region7: #{tpu_custom_call.1} parent=1 // loop_footer_branch
      %16 = sbr.rel target = $region3
    $region8: #{tpu_custom_call.1} parent=1 // loop_exit
      _
    %315 = vsyncpa [#allocation3], 1
    %s316 = scalar_lea.sflag [#allocation3], 1
    %317 = vsyncpa %s316, 1
    %318 = vsyncpa [#allocation6], 1
    %s319 = scalar_lea.sflag [#allocation6], 1
    %320 = vsyncpa %s319, 1
    %321 = vsyncpa [#allocation4], 1
    %s322 = scalar_lea.sflag [#allocation4], 1
    %323 = vsyncpa %s322, 1

</llo_original>
